<compile_context>
chip_gen: v6e
topology: v6e:2x2x1
jax: 0.10.0
libtpu: 0.0.40
codegen_flags: <defaults>
</compile_context>

<pallas_src>
import functools

import jax
import jax.numpy as jnp
from jax.experimental import pallas as pl
from jax.experimental.pallas import tpu as pltpu

LANES = 128
SUBLANES = 8
MAX_BLOCK_ROWS = 4096   # (4096, 128) f32 block = 2 MiB; 2 in x 2 bufs = 8 MiB VMEM
NCORE_SPLIT = 2         # leading "parallel" grid axis (both TCs on v7x; harmless elsewhere)


def _round_up(x, m):
    return (x + m - 1) // m * m


def _dice_bce_partial_kernel(x_ref, t_ref, out_ref, *, n, block_elems, blocks_per_core):
    """Accumulate per-lane partial sums for one (block_rows, 128) tile.

    out_ref: (8, 128) f32, resident across the reduction ("arbitrary") axis:
      row 0: sum(sigmoid(x) * t)               (intersection)
      row 1: sum(sigmoid(x))
      row 2: sum(t)
      row 3: sum(log(1 + exp(-sigmoid(x))))    (softplus part of the BCE term)
      rows 4..7: unused (kept zero) so the output stays a full (8, 128) tile.
    """
    c = pl.program_id(0)              # parallel axis (core split)
    i = pl.program_id(1)              # reduction axis

    @pl.when(i == 0)
    def _():
        out_ref[...] = jnp.zeros_like(out_ref)

    x = x_ref[...].astype(jnp.float32)
    t = t_ref[...].astype(jnp.float32)

    # sigmoid via tanh: a single EUP transcendental instead of exp + divide.
    s = 0.5 * jnp.tanh(0.5 * x) + 0.5
    # softplus(-s); s in (0, 1) so |s| = s, max(s, 0) = s, and log(1+y) has no
    # cancellation for y = exp(-s) in (e^-1, 1).
    sp = jnp.log(1.0 + jnp.exp(-s))

    # Remaining valid elements for this logical block (n is a trace-time const).
    rem = n - (c * blocks_per_core + i) * block_elems

    def accum(s_v, t_v, sp_v):
        out_ref[0:1, :] += jnp.sum(s_v * t_v, axis=0, keepdims=True)
        out_ref[1:2, :] += jnp.sum(s_v, axis=0, keepdims=True)
        out_ref[2:3, :] += jnp.sum(t_v, axis=0, keepdims=True)
        out_ref[3:4, :] += jnp.sum(sp_v, axis=0, keepdims=True)

    # Hot path: full block, no masking work at all.
    @pl.when(rem >= block_elems)
    def _():
        accum(s, t, sp)

    # Tail / boundary / duplicated-clamped block: mask out padded elements,
    # out-of-bounds boundary rows (unspecified contents, possibly NaN — where()
    # does not propagate them), and clamped duplicate blocks (rem <= 0).
    @pl.when(rem < block_elems)
    def _():
        block_rows = s.shape[0]
        row = jax.lax.broadcasted_iota(jnp.int32, (block_rows, LANES), 0)
        lane = jax.lax.broadcasted_iota(jnp.int32, (block_rows, LANES), 1)
        valid = (row * LANES + lane) < rem
        zero = jnp.zeros_like(s)
        accum(jnp.where(valid, s, zero),
              jnp.where(valid, t, zero),
              jnp.where(valid, sp, zero))


def dice_bce_loss(inputs, targets, smooth=1.0):
    """JAX/Pallas equivalent of DiceBCELoss.forward(inputs, targets, smooth)."""
    n = int(inputs.size)
    x = inputs.reshape(-1)            # contiguous reshape: free
    t = targets.reshape(-1)

    # Pad only when needed, and only to the next multiple of 8*128 = 1024 so the
    # (rows, 128) slab is sublane-aligned.  Typical segmentation shapes need no
    # pad (no extra HBM copy); ragged shapes pay one small pad copy and the tail
    # is masked in-kernel.
    padded_n = _round_up(n, SUBLANES * LANES)
    if padded_n != n:
        x = jnp.pad(x, (0, padded_n - n))
        t = jnp.pad(t, (0, padded_n - n))
    rows = padded_n // LANES
    x = x.reshape(rows, LANES)
    t = t.reshape(rows, LANES)

    block_rows = min(MAX_BLOCK_ROWS, rows)        # rows % 8 == 0 by construction
    block_elems = block_rows * LANES
    nblocks = pl.cdiv(rows, block_rows)           # boundary block handled by mask
    nsplit = NCORE_SPLIT if nblocks >= NCORE_SPLIT else 1
    blocks_per_core = pl.cdiv(nblocks, nsplit)

    def in_map(c, i):
        # Clamp so an odd block count never produces a fully out-of-range block
        # index; the duplicated block gets rem <= 0 in-kernel and contributes 0.
        return (jnp.minimum(c * blocks_per_core + i, nblocks - 1), 0)

    def out_map(c, i):
        return (c, 0)

    kernel = functools.partial(
        _dice_bce_partial_kernel,
        n=n, block_elems=block_elems, blocks_per_core=blocks_per_core)

    partials = pl.pallas_call(
        kernel,
        out_shape=jax.ShapeDtypeStruct((nsplit * SUBLANES, LANES), jnp.float32),
        grid=(nsplit, blocks_per_core),
        in_specs=[
            pl.BlockSpec((block_rows, LANES), in_map),
            pl.BlockSpec((block_rows, LANES), in_map),
        ],
        out_specs=pl.BlockSpec((SUBLANES, LANES), out_map),
        compiler_params=pltpu.CompilerParams(
            dimension_semantics=("parallel", "arbitrary"),
        ),
    )(x, t)

    # Final tiny reductions + scalar dice/BCE combination in plain JAX.
    p = partials.reshape(nsplit, SUBLANES, LANES)
    sums = jnp.sum(p[:, :4, :], axis=(0, 2))                 # (4,)
    inter, s_sum, t_sum, sp_sum = sums[0], sums[1], sums[2], sums[3]

    bce_mean = (s_sum - inter + sp_sum) / jnp.float32(n)
    dice_loss = 1.0 - (2.0 * inter + smooth) / (s_sum + t_sum + smooth)
    return bce_mean + dice_loss


def _reference_dice_bce(inputs, targets, smooth=1.0):
    # Pure-JAX reference mirroring the PyTorch module exactly
    # (including the double-sigmoid quirk).
    s = jax.nn.sigmoid(inputs.astype(jnp.float32)).reshape(-1)
    t = targets.astype(jnp.float32).reshape(-1)
    inter = jnp.sum(s * t)
    dice_loss = 1.0 - (2.0 * inter + smooth) / (jnp.sum(s) + jnp.sum(t) + smooth)
    bce = jnp.mean(jnp.maximum(s, 0.0) - s * t + jnp.log1p(jnp.exp(-jnp.abs(s))))
    return bce + dice_loss


if __name__ == "__main__":
    key = jax.random.PRNGKey(0)

    # Primary shape (NCHW segmentation logits), a ragged shape (exercises the
    # in-kernel tail mask + pad path), and a multi-block shape (exercises the
    # megacore split, cross-step accumulation and the boundary-row mask).
    shapes = [(2, 4, 16, 16), (3, 5, 7, 11), (10, 4, 128, 128)]
    for idx, shape in enumerate(shapes):
        k1, k2 = jax.random.split(jax.random.fold_in(key, idx))
        inputs = jax.random.normal(k1, shape, dtype=jnp.float32)       # logits
        targets = jax.random.bernoulli(k2, 0.5, shape).astype(jnp.float32)

        loss = jax.block_until_ready(dice_bce_loss(inputs, targets, smooth=1.0))
        ref = _reference_dice_bce(inputs, targets, smooth=1.0)
        assert jnp.allclose(loss, ref, atol=1e-4, rtol=1e-4), (shape, float(loss), float(ref))

    print("KERNEL_OK")
</pallas_src>

<mosaic_0001>
module attributes {stable_mosaic.version = 11 : i64} {
  func.func @_dice_bce_partial_kernel(%arg0: i32, %arg1: i32, %arg2: memref<16x128xf32, #tpu.memory_space<vmem>>, %arg3: memref<16x128xf32, #tpu.memory_space<vmem>>, %arg4: memref<8x128xf32, #tpu.memory_space<vmem>>) attributes {dimension_semantics = [#tpu.dimension_semantics<parallel>, #tpu.dimension_semantics<arbitrary>], iteration_bounds = array<i64: 1, 1>, scalar_prefetch = 0 : i64, scratch_operands = 0 : i64, tpu.core_type = #tpu.core_type<tc>, window_params = [{transform_indices = @transform_0, window_bounds = array<i64: 16, 128>}, {transform_indices = @transform_1, window_bounds = array<i64: 16, 128>}, {transform_indices = @transform_2, window_bounds = array<i64: 8, 128>}]} {
    %c0_i32 = arith.constant 0 : i32
    %0 = arith.cmpi eq, %arg1, %c0_i32 : i32
    %1 = arith.extui %0 : i1 to i32
    %c0_i32_0 = arith.constant 0 : i32
    %2 = arith.cmpi ne, %1, %c0_i32_0 : i32
    scf.if %2 {
      %cst_13 = arith.constant 0.000000e+00 : f32
      %28 = vector.broadcast %cst_13 : f32 to vector<8x128xf32>
      %c0_14 = arith.constant 0 : index
      %c0_15 = arith.constant 0 : index
      %29 = vector.load %arg4[%c0_14, %c0_15] : memref<8x128xf32, #tpu.memory_space<vmem>>, vector<8x128xf32>
      tpu.vector_store %arg4[%c0_14, %c0_15], %28 {strides = array<i32>} : memref<8x128xf32, #tpu.memory_space<vmem>>, vector<8x128xf32>,
    } else {
    }
    %c0 = arith.constant 0 : index
    %c0_1 = arith.constant 0 : index
    %3 = vector.load %arg2[%c0, %c0_1] : memref<16x128xf32, #tpu.memory_space<vmem>>, vector<16x128xf32>
    %c0_2 = arith.constant 0 : index
    %c0_3 = arith.constant 0 : index
    %4 = vector.load %arg3[%c0_2, %c0_3] : memref<16x128xf32, #tpu.memory_space<vmem>>, vector<16x128xf32>
    %cst = arith.constant 5.000000e-01 : f32
    %5 = vector.broadcast %cst : f32 to vector<16x128xf32>
    %6 = arith.mulf %5, %3 : vector<16x128xf32>
    %7 = math.tanh %6 : vector<16x128xf32>
    %cst_4 = arith.constant 5.000000e-01 : f32
    %8 = vector.broadcast %cst_4 : f32 to vector<16x128xf32>
    %9 = arith.mulf %8, %7 : vector<16x128xf32>
    %cst_5 = arith.constant 5.000000e-01 : f32
    %10 = vector.broadcast %cst_5 : f32 to vector<16x128xf32>
    %11 = arith.addf %9, %10 : vector<16x128xf32>
    %cst_6 = arith.constant 0.000000e+00 : f32
    %12 = vector.broadcast %cst_6 : f32 to vector<16x128xf32>
    %13 = arith.subf %12, %11 : vector<16x128xf32>
    %14 = math.exp %13 : vector<16x128xf32>
    %cst_7 = arith.constant 1.000000e+00 : f32
    %15 = vector.broadcast %cst_7 : f32 to vector<16x128xf32>
    %16 = arith.addf %15, %14 : vector<16x128xf32>
    %17 = math.log %16 : vector<16x128xf32>
    %c1_i32 = arith.constant 1 : i32
    %18 = arith.muli %arg0, %c1_i32 : i32
    %19 = arith.addi %18, %arg1 : i32
    %c2048_i32 = arith.constant 2048 : i32
    %20 = arith.muli %19, %c2048_i32 : i32
    %c2048_i32_8 = arith.constant 2048 : i32
    %21 = arith.subi %c2048_i32_8, %20 : i32
    %c2048_i32_9 = arith.constant 2048 : i32
    %22 = arith.cmpi sge, %21, %c2048_i32_9 : i32
    %23 = arith.extui %22 : i1 to i32
    %c0_i32_10 = arith.constant 0 : i32
    %24 = arith.cmpi ne, %23, %c0_i32_10 : i32
    scf.if %24 {
      %c0_13 = arith.constant 0 : index
      %c0_14 = arith.constant 0 : index
      %28 = vector.load %arg4[%c0_13, %c0_14] : memref<8x128xf32, #tpu.memory_space<vmem>>, vector<1x128xf32>
      %29 = arith.mulf %11, %4 : vector<16x128xf32>
      %cst_15 = arith.constant dense<0.000000e+00> : vector<128xf32>
      %30 = vector.multi_reduction <add>, %29, %cst_15 [0] : vector<16x128xf32> to vector<128xf32>
      %31 = vector.shape_cast %30 : vector<128xf32> to vector<1x128xf32>
      %32 = arith.addf %28, %31 : vector<1x128xf32>
      %c0_16 = arith.constant 0 : index
      %c0_17 = arith.constant 0 : index
      %33 = vector.load %arg4[%c0_16, %c0_17] : memref<8x128xf32, #tpu.memory_space<vmem>>, vector<1x128xf32>
      tpu.vector_store %arg4[%c0_16, %c0_17], %32 {strides = array<i32>} : memref<8x128xf32, #tpu.memory_space<vmem>>, vector<1x128xf32>,
      %c1 = arith.constant 1 : index
      %c0_18 = arith.constant 0 : index
      %34 = vector.load %arg4[%c1, %c0_18] : memref<8x128xf32, #tpu.memory_space<vmem>>, vector<1x128xf32>
      %cst_19 = arith.constant dense<0.000000e+00> : vector<128xf32>
      %35 = vector.multi_reduction <add>, %11, %cst_19 [0] : vector<16x128xf32> to vector<128xf32>
      %36 = vector.shape_cast %35 : vector<128xf32> to vector<1x128xf32>
      %37 = arith.addf %34, %36 : vector<1x128xf32>
      %c1_20 = arith.constant 1 : index
      %c0_21 = arith.constant 0 : index
      %38 = vector.load %arg4[%c1_20, %c0_21] : memref<8x128xf32, #tpu.memory_space<vmem>>, vector<1x128xf32>
      tpu.vector_store %arg4[%c1_20, %c0_21], %37 {strides = array<i32>} : memref<8x128xf32, #tpu.memory_space<vmem>>, vector<1x128xf32>,
      %c2 = arith.constant 2 : index
      %c0_22 = arith.constant 0 : index
      %39 = vector.load %arg4[%c2, %c0_22] : memref<8x128xf32, #tpu.memory_space<vmem>>, vector<1x128xf32>
      %cst_23 = arith.constant dense<0.000000e+00> : vector<128xf32>
      %40 = vector.multi_reduction <add>, %4, %cst_23 [0] : vector<16x128xf32> to vector<128xf32>
      %41 = vector.shape_cast %40 : vector<128xf32> to vector<1x128xf32>
      %42 = arith.addf %39, %41 : vector<1x128xf32>
      %c2_24 = arith.constant 2 : index
      %c0_25 = arith.constant 0 : index
      %43 = vector.load %arg4[%c2_24, %c0_25] : memref<8x128xf32, #tpu.memory_space<vmem>>, vector<1x128xf32>
      tpu.vector_store %arg4[%c2_24, %c0_25], %42 {strides = array<i32>} : memref<8x128xf32, #tpu.memory_space<vmem>>, vector<1x128xf32>,
      %c3 = arith.constant 3 : index
      %c0_26 = arith.constant 0 : index
      %44 = vector.load %arg4[%c3, %c0_26] : memref<8x128xf32, #tpu.memory_space<vmem>>, vector<1x128xf32>
      %cst_27 = arith.constant dense<0.000000e+00> : vector<128xf32>
      %45 = vector.multi_reduction <add>, %17, %cst_27 [0] : vector<16x128xf32> to vector<128xf32>
      %46 = vector.shape_cast %45 : vector<128xf32> to vector<1x128xf32>
      %47 = arith.addf %44, %46 : vector<1x128xf32>
      %c3_28 = arith.constant 3 : index
      %c0_29 = arith.constant 0 : index
      %48 = vector.load %arg4[%c3_28, %c0_29] : memref<8x128xf32, #tpu.memory_space<vmem>>, vector<1x128xf32>
      tpu.vector_store %arg4[%c3_28, %c0_29], %47 {strides = array<i32>} : memref<8x128xf32, #tpu.memory_space<vmem>>, vector<1x128xf32>,
    } else {
    }
    %c2048_i32_11 = arith.constant 2048 : i32
    %25 = arith.cmpi slt, %21, %c2048_i32_11 : i32
    %26 = arith.extui %25 : i1 to i32
    %c0_i32_12 = arith.constant 0 : i32
    %27 = arith.cmpi ne, %26, %c0_i32_12 : i32
    scf.if %27 {
      %28 = tpu.iota {dimensions = array<i32: 0>} : vector<16x128xi32>
      %29 = tpu.iota {dimensions = array<i32: 1>} : vector<16x128xi32>
      %c128_i32 = arith.constant 128 : i32
      %30 = vector.broadcast %c128_i32 : i32 to vector<16x128xi32>
      %31 = arith.muli %28, %30 : vector<16x128xi32>
      %32 = arith.addi %31, %29 : vector<16x128xi32>
      %33 = vector.broadcast %21 : i32 to vector<16x128xi32>
      %34 = arith.cmpi slt, %32, %33 : vector<16x128xi32>
      %cst_13 = arith.constant 0.000000e+00 : f32
      %35 = vector.broadcast %cst_13 : f32 to vector<16x128xf32>
      %36 = arith.select %34, %11, %35 : vector<16x128xi1>, vector<16x128xf32>
      %37 = arith.select %34, %4, %35 : vector<16x128xi1>, vector<16x128xf32>
      %38 = arith.select %34, %17, %35 : vector<16x128xi1>, vector<16x128xf32>
      %c0_14 = arith.constant 0 : index
      %c0_15 = arith.constant 0 : index
      %39 = vector.load %arg4[%c0_14, %c0_15] : memref<8x128xf32, #tpu.memory_space<vmem>>, vector<1x128xf32>
      %40 = arith.mulf %36, %37 : vector<16x128xf32>
      %cst_16 = arith.constant dense<0.000000e+00> : vector<128xf32>
      %41 = vector.multi_reduction <add>, %40, %cst_16 [0] : vector<16x128xf32> to vector<128xf32>
      %42 = vector.shape_cast %41 : vector<128xf32> to vector<1x128xf32>
      %43 = arith.addf %39, %42 : vector<1x128xf32>
      %c0_17 = arith.constant 0 : index
      %c0_18 = arith.constant 0 : index
      %44 = vector.load %arg4[%c0_17, %c0_18] : memref<8x128xf32, #tpu.memory_space<vmem>>, vector<1x128xf32>
      tpu.vector_store %arg4[%c0_17, %c0_18], %43 {strides = array<i32>} : memref<8x128xf32, #tpu.memory_space<vmem>>, vector<1x128xf32>,
      %c1 = arith.constant 1 : index
      %c0_19 = arith.constant 0 : index
      %45 = vector.load %arg4[%c1, %c0_19] : memref<8x128xf32, #tpu.memory_space<vmem>>, vector<1x128xf32>
      %cst_20 = arith.constant dense<0.000000e+00> : vector<128xf32>
      %46 = vector.multi_reduction <add>, %36, %cst_20 [0] : vector<16x128xf32> to vector<128xf32>
      %47 = vector.shape_cast %46 : vector<128xf32> to vector<1x128xf32>
      %48 = arith.addf %45, %47 : vector<1x128xf32>
      %c1_21 = arith.constant 1 : index
      %c0_22 = arith.constant 0 : index
      %49 = vector.load %arg4[%c1_21, %c0_22] : memref<8x128xf32, #tpu.memory_space<vmem>>, vector<1x128xf32>
      tpu.vector_store %arg4[%c1_21, %c0_22], %48 {strides = array<i32>} : memref<8x128xf32, #tpu.memory_space<vmem>>, vector<1x128xf32>,
      %c2 = arith.constant 2 : index
      %c0_23 = arith.constant 0 : index
      %50 = vector.load %arg4[%c2, %c0_23] : memref<8x128xf32, #tpu.memory_space<vmem>>, vector<1x128xf32>
      %cst_24 = arith.constant dense<0.000000e+00> : vector<128xf32>
      %51 = vector.multi_reduction <add>, %37, %cst_24 [0] : vector<16x128xf32> to vector<128xf32>
      %52 = vector.shape_cast %51 : vector<128xf32> to vector<1x128xf32>
      %53 = arith.addf %50, %52 : vector<1x128xf32>
      %c2_25 = arith.constant 2 : index
      %c0_26 = arith.constant 0 : index
      %54 = vector.load %arg4[%c2_25, %c0_26] : memref<8x128xf32, #tpu.memory_space<vmem>>, vector<1x128xf32>
      tpu.vector_store %arg4[%c2_25, %c0_26], %53 {strides = array<i32>} : memref<8x128xf32, #tpu.memory_space<vmem>>, vector<1x128xf32>,
      %c3 = arith.constant 3 : index
      %c0_27 = arith.constant 0 : index
      %55 = vector.load %arg4[%c3, %c0_27] : memref<8x128xf32, #tpu.memory_space<vmem>>, vector<1x128xf32>
      %cst_28 = arith.constant dense<0.000000e+00> : vector<128xf32>
      %56 = vector.multi_reduction <add>, %38, %cst_28 [0] : vector<16x128xf32> to vector<128xf32>
      %57 = vector.shape_cast %56 : vector<128xf32> to vector<1x128xf32>
      %58 = arith.addf %55, %57 : vector<1x128xf32>
      %c3_29 = arith.constant 3 : index
      %c0_30 = arith.constant 0 : index
      %59 = vector.load %arg4[%c3_29, %c0_30] : memref<8x128xf32, #tpu.memory_space<vmem>>, vector<1x128xf32>
      tpu.vector_store %arg4[%c3_29, %c0_30], %58 {strides = array<i32>} : memref<8x128xf32, #tpu.memory_space<vmem>>, vector<1x128xf32>,
    } else {
    }
    return
  }
  func.func @transform_0(%arg0: i32, %arg1: i32) -> (i32, i32) {
    %c1_i32 = arith.constant 1 : i32
    %0 = arith.muli %arg0, %c1_i32 : i32
    %1 = arith.addi %0, %arg1 : i32
    %c0_i32 = arith.constant 0 : i32
    %2 = arith.minsi %1, %c0_i32 : i32
    %c0_i32_0 = arith.constant 0 : i32
    %c0_i32_1 = arith.constant 0 : i32
    return %2, %c0_i32_0 : i32, i32
  }
  func.func @transform_1(%arg0: i32, %arg1: i32) -> (i32, i32) {
    %c1_i32 = arith.constant 1 : i32
    %0 = arith.muli %arg0, %c1_i32 : i32
    %1 = arith.addi %0, %arg1 : i32
    %c0_i32 = arith.constant 0 : i32
    %2 = arith.minsi %1, %c0_i32 : i32
    %c0_i32_0 = arith.constant 0 : i32
    %c0_i32_1 = arith.constant 0 : i32
    return %2, %c0_i32_0 : i32, i32
  }
  func.func @transform_2(%arg0: i32, %arg1: i32) -> (i32, i32) {
    %c0_i32 = arith.constant 0 : i32
    %c0_i32_0 = arith.constant 0 : i32
    return %arg0, %c0_i32 : i32, i32
  }
}

</mosaic_0001>

<llo_original>
// kernel: tpu_custom_call.1
$region0: #{tpu_custom_call.1}
  #allocation0 [shape = 'u32[]', space=smem, size = 0x4, offset = 0x4, fixed_abs, tag = 'smem constant byte address 0x4 - core index']
  #allocation1 [shape = 'u32[144,128]{1,0:T(1,128)}', space=vmem, size = 0x12000, scoped, tag = 'internal scratch']
  %s0 = inlined_call_operand.hbm [shape: f32[16,128], index: 0, kind: input, shape index: {}]
  %s1 = inlined_call_operand.hbm [shape: f32[16,128], index: 1, kind: input, shape index: {}]
  %s2 = inlined_call_operand.hbm [shape: f32[8,128], index: 2, kind: output, shape index: {}]
  %s3 = sld [smem:[#allocation0]]
  $region38: #{tpu_custom_call.1} parent=0
    _
  %s5 = ssub.s32 1, %s3
  %s6 = scalar_select 0, %s5, %s3
  $region1: #{tpu_custom_call.1} parent=0
    #allocation2 [shape = 'u8[8192]{0}', space=vmem, size = 0x2000, scoped, tag = 'input window, operand 0, single buffered']
    #allocation3 [shape = 's32[1]{0}', space=sflag, size = 0x4, scoped, tag = 'scoped memory for tpu_custom_call.1']
    #allocation4 [shape = 's32[1]{0}', space=sflag, size = 0x4, scoped, tag = 'scoped memory for tpu_custom_call.1']
    #allocation5 [shape = 'u8[8192]{0}', space=vmem, size = 0x2000, scoped, tag = 'input window, operand 1, single buffered']
    #allocation6 [shape = 's32[1]{0}', space=sflag, size = 0x4, scoped, tag = 'scoped memory for tpu_custom_call.1']
    #allocation7 [shape = 'u8[4096]{0}', space=vmem, size = 0x1000, scoped, tag = 'output window, operand 0, single buffered']
    %7 = vsyncpa [#allocation3], 0
    %8 = vsyncpa [#allocation6], 0
    %9 = vsyncpa [#allocation4], 0
    // Predicated region
    $region2: #{tpu_custom_call.1} parent=1 // pred_check
      _
    $region3: #{tpu_custom_call.1} parent=1 // pred_check_branch
      %11 = sbr.rel (0) target = $region5
    $region4: #{tpu_custom_call.1} parent=1 // pred_region
      %s12 = sadd.s32 0, 0
      %p13 = scmp.lt.s32.totalorder %s12, 0
      %s14 = scalar_select %p13, %s12, 0
      %s15 = smul.u32 2, %s14
      %s17 = ssub.s32 256, 256
      %18 = vsyncadd [#allocation3], %s17
      %s19 = smul.addr %s15, 128
      %s20 = scalar_lea.hbm %s0, %s19
      %s21 = sshll.u32 [#allocation2], 4
      %s22 = int_to_ptr.vmem [resolvable:$true] %s21
      %27 = dma.hbm_to_vmem [thread:$0]  %s20, 256, %s22, [#allocation3], 128, 128, 8
    $region5: #{tpu_custom_call.1} parent=1 // pred_fallthru
      _
    // Predicated region
    $region6: #{tpu_custom_call.1} parent=1 // pred_check
      _
    $region7: #{tpu_custom_call.1} parent=1 // pred_check_branch
      %29 = sbr.rel (0) target = $region9
    $region8: #{tpu_custom_call.1} parent=1 // pred_region
      %s30 = sadd.s32 0, 0
      %p31 = scmp.lt.s32.totalorder %s30, 0
      %s32 = scalar_select %p31, %s30, 0
      %s33 = smul.u32 2, %s32
      %s35 = ssub.s32 256, 256
      %36 = vsyncadd [#allocation6], %s35
      %s37 = smul.addr %s33, 128
      %s38 = scalar_lea.hbm %s1, %s37
      %s39 = sshll.u32 [#allocation5], 4
      %s40 = int_to_ptr.vmem [resolvable:$true] %s39
      %45 = dma.hbm_to_vmem [thread:$0]  %s38, 256, %s40, [#allocation6], 128, 128, 8
    $region9: #{tpu_custom_call.1} parent=1 // pred_fallthru
      _
    // Predicated region
    $region10: #{tpu_custom_call.1} parent=1 // pred_check
      _
    $region11: #{tpu_custom_call.1} parent=1 // pred_check_branch
      %47 = sbr.rel (0) target = $region13
    $region12: #{tpu_custom_call.1} parent=1 // pred_region
      %48 = dma.done [#allocation3], 256
    $region13: #{tpu_custom_call.1} parent=1 // pred_fallthru
      _
    // Predicated region
    $region14: #{tpu_custom_call.1} parent=1 // pred_check
      _
    $region15: #{tpu_custom_call.1} parent=1 // pred_check_branch
      %50 = sbr.rel (0) target = $region17
    $region16: #{tpu_custom_call.1} parent=1 // pred_region
      %51 = dma.done [#allocation6], 256
    $region17: #{tpu_custom_call.1} parent=1 // pred_fallthru
      _
    %s52 = sadd.s32 0, 0
    %p53 = scmp.lt.s32.totalorder %s52, 0
    %s54 = scalar_select %p53, %s52, 0
    %s55 = smul.u32 2, %s54
    %s56 = sadd.s32 0, 0
    %p57 = scmp.lt.s32.totalorder %s56, 0
    %s58 = scalar_select %p57, %s56, 0
    %s59 = smul.u32 2, %s58
    %p60 = scmp.eq.s32.totalorder 0, 0
    // Predicated region
    $region18: #{tpu_custom_call.1} parent=1 // pred_check
      %p61 = pneg %p60
    $region19: #{tpu_custom_call.1} parent=1 // pred_check_branch
      %63 = sbr.rel (%p61) target = $region21
    $region20: #{tpu_custom_call.1} parent=1 // pred_region
      %64 = vst [vmem:[#allocation7] sm:$0xff] 0.0
    $region21: #{tpu_custom_call.1} parent=1 // pred_fallthru
      _
    %v65 = vld [vmem:[#allocation2] sm:$0xff]
    %v66 = vld [vmem:[#allocation2 + $0x8] sm:$0xff]
    %v67 = vld [vmem:[#allocation5] sm:$0xff]
    %v68 = vld [vmem:[#allocation5 + $0x8] sm:$0xff]
    %v69 = vmul.f32 %v65, 0.5
    %v70 = vmul.f32 %v66, 0.5
    %v71 = vtanh.pop %v69
    %v72 = vtanh.pop %v70
    %v73 = vmul.f32 %v71, 0.5
    %v74 = vmul.f32 %v72, 0.5
    %v75 = vadd.f32 %v73, 0.5
    %v76 = vadd.f32 %v74, 0.5
    %v77 = vsub.f32 0.0, %v75
    %v78 = vsub.f32 0.0, %v76
    %v79 = vmul.f32 %v77, 1.442695
    %v80 = vpow.pop %v79
    %v81 = vmul.f32 %v78, 1.442695
    %v82 = vpow.pop %v81
    %v83 = vadd.f32 %v80, 1.0
    %v84 = vadd.f32 %v82, 1.0
    %v85 = vlog2.pop %v83
    %v86 = vmul.f32 %v85, 0.6931472
    %v87 = vlog2.pop %v84
    %v88 = vmul.f32 %v87, 0.6931472
    %s89 = sadd.s32 0, 0
    %s90 = smul.u32 %s89, 2048
    %s91 = ssub.s32 2048, %s90
    %p92 = scmp.ge.s32.totalorder %s91, 2048
    // Predicated region
    $region22: #{tpu_custom_call.1} parent=1 // pred_check
      %p93 = pneg %p92
    $region23: #{tpu_custom_call.1} parent=1 // pred_check_branch
      %95 = sbr.rel (%p93) target = $region25
    $region24: #{tpu_custom_call.1} parent=1 // pred_region
      %v96 = vld [vmem:[#allocation7] sm:$0x1]
      %v97 = vmul.f32 %v75, %v67
      %v98 = vmul.f32 %v76, %v68
      %v99 = vadd.f32 %v97, %v98
      %v100 = vrot.slane %v99, 4
      %v101 = vadd.f32 %v99, %v100
      %v102 = vrot.slane %v101, 2
      %v103 = vadd.f32 %v101, %v102
      %v104 = vrot.slane %v103, 1
      %v105 = vadd.f32 %v103, %v104
      %v106 = vadd.f32 %v96, %v105
      %107 = vst [vmem:[#allocation7] sm:$0x1] %v106
      %v108 = vld [vmem:[#allocation7 + $0x1] sm:$0x1]
      %v109 = vadd.f32 %v75, %v76
      %v110 = vrot.slane %v109, 4
      %v111 = vadd.f32 %v109, %v110
      %v112 = vrot.slane %v111, 2
      %v113 = vadd.f32 %v111, %v112
      %v114 = vrot.slane %v113, 1
      %v115 = vadd.f32 %v113, %v114
      %v116 = vadd.f32 %v108, %v115
      %117 = vst [vmem:[#allocation7 + $0x1] sm:$0x1] %v116
      %v118 = vld [vmem:[#allocation7 + $0x2] sm:$0x1]
      %v119 = vadd.f32 %v67, %v68
      %v120 = vrot.slane %v119, 4
      %v121 = vadd.f32 %v119, %v120
      %v122 = vrot.slane %v121, 2
      %v123 = vadd.f32 %v121, %v122
      %v124 = vrot.slane %v123, 1
      %v125 = vadd.f32 %v123, %v124
      %v126 = vadd.f32 %v118, %v125
      %127 = vst [vmem:[#allocation7 + $0x2] sm:$0x1] %v126
      %v128 = vld [vmem:[#allocation7 + $0x3] sm:$0x1]
      %v129 = vadd.f32 %v86, %v88
      %v130 = vrot.slane %v129, 4
      %v131 = vadd.f32 %v129, %v130
      %v132 = vrot.slane %v131, 2
      %v133 = vadd.f32 %v131, %v132
      %v134 = vrot.slane %v133, 1
      %v135 = vadd.f32 %v133, %v134
      %v136 = vadd.f32 %v128, %v135
      %137 = vst [vmem:[#allocation7 + $0x3] sm:$0x1] %v136
    $region25: #{tpu_custom_call.1} parent=1 // pred_fallthru
      _
    %p138 = scmp.lt.s32.totalorder %s91, 2048
    // Predicated region
    $region26: #{tpu_custom_call.1} parent=1 // pred_check
      %p139 = pneg %p138
    $region27: #{tpu_custom_call.1} parent=1 // pred_check_branch
      %141 = sbr.rel (%p139) target = $region29
    $region28: #{tpu_custom_call.1} parent=1 // pred_region
      %v142 = vlaneseq
      %v143 = vshrl.u32 %v142, 7
      %v144 = vadd.s32 %v143, 8
      %v145 = vlaneseq
      %v146 = vand.u32 %v145, 127
      %v147 = vmul.u32 %v143, 128
      %v148 = vmul.u32 %v144, 128
      %v149 = vadd.s32 %v147, %v146
      %v150 = vadd.s32 %v148, %v146
      %v151 = vstv %s91
      %vm152 = vcmp.lt.s32.totalorder %v149, %v151
      %vm153 = vcmp.lt.s32.totalorder %v150, %v151
      %v154 = vsel %vm152, %v75, 0.0
      %v155 = vsel %vm153, %v76, 0.0
      %v156 = vsel %vm152, %v67, 0.0
      %v157 = vsel %vm153, %v68, 0.0
      %v158 = vsel %vm152, %v86, 0.0
      %v159 = vsel %vm153, %v88, 0.0
      %v160 = vld [vmem:[#allocation7] sm:$0x1]
      %v161 = vmul.f32 %v154, %v156
      %v162 = vmul.f32 %v155, %v157
      %v163 = vadd.f32 %v161, %v162
      %v164 = vrot.slane %v163, 4
      %v165 = vadd.f32 %v163, %v164
      %v166 = vrot.slane %v165, 2
      %v167 = vadd.f32 %v165, %v166
      %v168 = vrot.slane %v167, 1
      %v169 = vadd.f32 %v167, %v168
      %v170 = vadd.f32 %v160, %v169
      %171 = vst [vmem:[#allocation7] sm:$0x1] %v170
      %v172 = vld [vmem:[#allocation7 + $0x1] sm:$0x1]
      %v173 = vadd.f32 %v154, %v155
      %v174 = vrot.slane %v173, 4
      %v175 = vadd.f32 %v173, %v174
      %v176 = vrot.slane %v175, 2
      %v177 = vadd.f32 %v175, %v176
      %v178 = vrot.slane %v177, 1
      %v179 = vadd.f32 %v177, %v178
      %v180 = vadd.f32 %v172, %v179
      %181 = vst [vmem:[#allocation7 + $0x1] sm:$0x1] %v180
      %v182 = vld [vmem:[#allocation7 + $0x2] sm:$0x1]
      %v183 = vadd.f32 %v156, %v157
      %v184 = vrot.slane %v183, 4
      %v185 = vadd.f32 %v183, %v184
      %v186 = vrot.slane %v185, 2
      %v187 = vadd.f32 %v185, %v186
      %v188 = vrot.slane %v187, 1
      %v189 = vadd.f32 %v187, %v188
      %v190 = vadd.f32 %v182, %v189
      %191 = vst [vmem:[#allocation7 + $0x2] sm:$0x1] %v190
      %v192 = vld [vmem:[#allocation7 + $0x3] sm:$0x1]
      %v193 = vadd.f32 %v158, %v159
      %v194 = vrot.slane %v193, 4
      %v195 = vadd.f32 %v193, %v194
      %v196 = vrot.slane %v195, 2
      %v197 = vadd.f32 %v195, %v196
      %v198 = vrot.slane %v197, 1
      %v199 = vadd.f32 %v197, %v198
      %v200 = vadd.f32 %v192, %v199
      %201 = vst [vmem:[#allocation7 + $0x3] sm:$0x1] %v200
    $region29: #{tpu_custom_call.1} parent=1 // pred_fallthru
      _
    // Predicated region
    $region30: #{tpu_custom_call.1} parent=1 // pred_check
      _
    $region31: #{tpu_custom_call.1} parent=1 // pred_check_branch
      %203 = sbr.rel (0) target = $region33
    $region32: #{tpu_custom_call.1} parent=1 // pred_region
      %s205 = ssub.s32 128, 128
      %206 = vsyncadd [#allocation4], %s205
      %s208 = sshll.u32 [#allocation7], 4
      %s209 = int_to_ptr.vmem [resolvable:$true] %s208
      %211 = dma.vmem_to_hbm [thread:$0]  %s209, 128, %s2, [#allocation4]
    $region33: #{tpu_custom_call.1} parent=1 // pred_fallthru
      _
    // Predicated region
    $region34: #{tpu_custom_call.1} parent=1 // pred_check
      _
    $region35: #{tpu_custom_call.1} parent=1 // pred_check_branch
      %213 = sbr.rel (0) target = $region37
    $region36: #{tpu_custom_call.1} parent=1 // pred_region
      %214 = dma.done [#allocation4], 128
    $region37: #{tpu_custom_call.1} parent=1 // pred_fallthru
      _
    %215 = vsyncpa [#allocation3], 1
    %216 = vsyncpa [#allocation6], 1
    %217 = vsyncpa [#allocation4], 1

</llo_original>
